<compile_context>
chip_gen: v7x
topology: tpu7x:2x2x1
jax: 0.10.0
libtpu: 0.0.40
codegen_flags: <defaults>
</compile_context>

<pallas_src>
import jax
import jax.numpy as jnp
from jax.experimental import pallas as pl
from jax.experimental.pallas import tpu as pltpu

NEG_SLOPE = 0.01  # torch.nn.functional.leaky_relu default


def receiver_kernel(x_ref, w1_ref, b1_ref, w2_ref, b2_ref, o_ref):
    # fc1 + leaky_relu  (MXU matmul, f32 accumulate; elementwise on VPU)
    h = jnp.dot(x_ref[...], w1_ref[...], preferred_element_type=jnp.float32)
    h = h + b1_ref[...]
    h = jnp.maximum(h, NEG_SLOPE * h)           # leaky_relu: mul + max
    # fused output heads: single matmul onto [TB, 2F] lane-dense output
    o = jnp.dot(h, w2_ref[...], preferred_element_type=jnp.float32) + b2_ref[...]
    o_ref[...] = o.astype(o_ref.dtype)


def receiver_forward(x, params):
    """x: [B, n_hidden] float32.  Returns (out1, out2), each [B, n_features]
    (leading axis squeezed if B == 1, matching torch .squeeze(dim=0))."""
    w1, b1, w21, b21, w22, b22 = params
    B, n_hidden = x.shape
    h4 = w1.shape[1]
    n_features = w21.shape[1]

    # Fuse the two heads once, outside the hot path (param packing).
    w2 = jnp.concatenate([w21, w22], axis=1)    # [4F, 2F]
    b2 = jnp.concatenate([b21, b22], axis=1)    # [1, 2F]

    # Batch tiling: pipeline activation tiles over a grid when B is large and
    # divides cleanly; otherwise a single grid point over the full batch
    # (block == full array dim satisfies the (8,128) rule).
    TB = 512
    tb = TB if (B >= TB and B % TB == 0) else B
    grid = (B // tb,)

    out = pl.pallas_call(
        receiver_kernel,
        out_shape=jax.ShapeDtypeStruct((B, 2 * n_features), jnp.float32),
        grid=grid,
        in_specs=[
            # activations: tile over batch
            pl.BlockSpec((tb, n_hidden), lambda i: (i, 0)),
            # weights / biases: resident (same block for every grid step)
            pl.BlockSpec((n_hidden, h4), lambda i: (0, 0)),
            pl.BlockSpec((1, h4), lambda i: (0, 0)),
            pl.BlockSpec((h4, 2 * n_features), lambda i: (0, 0)),
            pl.BlockSpec((1, 2 * n_features), lambda i: (0, 0)),
        ],
        out_specs=pl.BlockSpec((tb, 2 * n_features), lambda i: (i, 0)),
        compiler_params=pltpu.CompilerParams(
            dimension_semantics=("parallel",),   # shards across 2 TCs on v7x
        ),
    )(x, w1, b1, w2, b2)

    # Split fused heads (layout glue, fused into surrounding XLA program).
    out1 = out[:, :n_features]
    out2 = out[:, n_features:]

    # torch .squeeze(dim=0): drop leading axis only if it has size 1.
    if B == 1:
        out1 = out1[0]
        out2 = out2[0]
    return out1, out2


def init_params(key, n_hidden, n_features):
    """Deterministic synthetic init matching the nn.Linear shapes."""
    k1, k2, k3, k4, k5, k6 = jax.random.split(key, 6)
    h4 = n_features * 4
    # stored as [in, out] (transpose of PyTorch's [out, in])
    w1 = jax.random.normal(k1, (n_hidden, h4), jnp.float32) * 0.1
    b1 = jax.random.normal(k2, (1, h4), jnp.float32) * 0.1
    w21 = jax.random.normal(k3, (h4, n_features), jnp.float32) * 0.1
    b21 = jax.random.normal(k4, (1, n_features), jnp.float32) * 0.1
    w22 = jax.random.normal(k5, (h4, n_features), jnp.float32) * 0.1
    b22 = jax.random.normal(k6, (1, n_features), jnp.float32) * 0.1
    return (w1, b1, w21, b21, w22, b22)


def receiver_reference(x, params):
    """Pure-JAX reference for a correctness check. Returns (out1, out2)."""
    w1, b1, w21, b21, w22, b22 = params
    h = x @ w1 + b1
    h = jnp.where(h > 0, h, NEG_SLOPE * h)
    return (h @ w21 + b21), (h @ w22 + b22)


if __name__ == "__main__":
    B, n_hidden, n_features = 2, 32, 16

    key = jax.random.PRNGKey(0)
    kx, kp = jax.random.split(key)
    x = jax.random.normal(kx, (B, n_hidden), jnp.float32)
    params = init_params(kp, n_hidden, n_features)

    out1, out2 = receiver_forward(x, params)
    out1, out2 = jax.block_until_ready((out1, out2))

    ref1, ref2 = receiver_reference(x, params)
    assert out1.shape == (B, n_features) and out2.shape == (B, n_features)
    assert jnp.allclose(out1, ref1, atol=1e-5, rtol=1e-5)
    assert jnp.allclose(out2, ref2, atol=1e-5, rtol=1e-5)

    # Also exercise a batch-tiled path (B multiple of the tile) for coverage.
    B2 = 1024
    x2 = jax.random.normal(kx, (B2, n_hidden), jnp.float32)
    o1b, o2b = jax.block_until_ready(receiver_forward(x2, params))
    r1b, r2b = receiver_reference(x2, params)
    assert jnp.allclose(o1b, r1b, atol=1e-5, rtol=1e-5)
    assert jnp.allclose(o2b, r2b, atol=1e-5, rtol=1e-5)

    print("KERNEL_OK")
</pallas_src>

<mosaic_0001>
module attributes {stable_mosaic.version = 11 : i64} {
  func.func @receiver_kernel(%arg0: i32, %arg1: memref<2x32xf32, #tpu.memory_space<vmem>>, %arg2: memref<32x64xf32, #tpu.memory_space<vmem>>, %arg3: memref<1x64xf32, #tpu.memory_space<vmem>>, %arg4: memref<64x32xf32, #tpu.memory_space<vmem>>, %arg5: memref<1x32xf32, #tpu.memory_space<vmem>>, %arg6: memref<2x32xf32, #tpu.memory_space<vmem>>) attributes {dimension_semantics = [#tpu.dimension_semantics<parallel>], iteration_bounds = array<i64: 1>, scalar_prefetch = 0 : i64, scratch_operands = 0 : i64, tpu.core_type = #tpu.core_type<tc>, window_params = [{transform_indices = @transform_0, window_bounds = array<i64: 2, 32>}, {pipeline_mode = #tpu.pipeline_mode<synchronous>, transform_indices = @transform_1, window_bounds = array<i64: 32, 64>}, {pipeline_mode = #tpu.pipeline_mode<synchronous>, transform_indices = @transform_2, window_bounds = array<i64: 1, 64>}, {pipeline_mode = #tpu.pipeline_mode<synchronous>, transform_indices = @transform_3, window_bounds = array<i64: 64, 32>}, {pipeline_mode = #tpu.pipeline_mode<synchronous>, transform_indices = @transform_4, window_bounds = array<i64: 1, 32>}, {transform_indices = @transform_5, window_bounds = array<i64: 2, 32>}]} {
    %c0 = arith.constant 0 : index
    %c0_0 = arith.constant 0 : index
    %0 = vector.load %arg1[%c0, %c0_0] : memref<2x32xf32, #tpu.memory_space<vmem>>, vector<2x32xf32>
    %c0_1 = arith.constant 0 : index
    %c0_2 = arith.constant 0 : index
    %1 = vector.load %arg2[%c0_1, %c0_2] : memref<32x64xf32, #tpu.memory_space<vmem>>, vector<32x64xf32>
    %cst = arith.constant dense<0.000000e+00> : vector<2x64xf32>
    %2 = tpu.matmul %0, %1, %cst {dimension_numbers = #tpu.dot_dimension_numbers<[1], [0], [0], [1], [0, 0, 1, 1], [], []>} : vector<2x32xf32>, vector<32x64xf32>, vector<2x64xf32> -> vector<2x64xf32>
    %c0_3 = arith.constant 0 : index
    %c0_4 = arith.constant 0 : index
    %3 = vector.load %arg3[%c0_3, %c0_4] : memref<1x64xf32, #tpu.memory_space<vmem>>, vector<1x64xf32>
    %4 = vector.broadcast %3 : vector<1x64xf32> to vector<2x64xf32>
    %5 = arith.addf %2, %4 : vector<2x64xf32>
    %cst_5 = arith.constant 0.00999999977 : f32
    %6 = vector.broadcast %cst_5 : f32 to vector<2x64xf32>
    %7 = arith.mulf %6, %5 : vector<2x64xf32>
    %8 = arith.maximumf %5, %7 : vector<2x64xf32>
    %c0_6 = arith.constant 0 : index
    %c0_7 = arith.constant 0 : index
    %9 = vector.load %arg4[%c0_6, %c0_7] : memref<64x32xf32, #tpu.memory_space<vmem>>, vector<64x32xf32>
    %cst_8 = arith.constant dense<0.000000e+00> : vector<2x32xf32>
    %10 = tpu.matmul %8, %9, %cst_8 {dimension_numbers = #tpu.dot_dimension_numbers<[1], [0], [0], [1], [0, 0, 1, 1], [], []>} : vector<2x64xf32>, vector<64x32xf32>, vector<2x32xf32> -> vector<2x32xf32>
    %c0_9 = arith.constant 0 : index
    %c0_10 = arith.constant 0 : index
    %11 = vector.load %arg5[%c0_9, %c0_10] : memref<1x32xf32, #tpu.memory_space<vmem>>, vector<1x32xf32>
    %12 = vector.broadcast %11 : vector<1x32xf32> to vector<2x32xf32>
    %13 = arith.addf %10, %12 : vector<2x32xf32>
    %c0_11 = arith.constant 0 : index
    %c0_12 = arith.constant 0 : index
    %14 = vector.load %arg6[%c0_11, %c0_12] : memref<2x32xf32, #tpu.memory_space<vmem>>, vector<2x32xf32>
    tpu.vector_store %arg6[%c0_11, %c0_12], %13 {strides = array<i32>} : memref<2x32xf32, #tpu.memory_space<vmem>>, vector<2x32xf32>,
    return
  }
  func.func @transform_0(%arg0: i32) -> (i32, i32) {
    %c0_i32 = arith.constant 0 : i32
    %c0_i32_0 = arith.constant 0 : i32
    return %arg0, %c0_i32 : i32, i32
  }
  func.func @transform_1(%arg0: i32) -> (i32, i32) {
    %c0_i32 = arith.constant 0 : i32
    %c0_i32_0 = arith.constant 0 : i32
    %c0_i32_1 = arith.constant 0 : i32
    return %c0_i32, %c0_i32_0 : i32, i32
  }
  func.func @transform_2(%arg0: i32) -> (i32, i32) {
    %c0_i32 = arith.constant 0 : i32
    %c0_i32_0 = arith.constant 0 : i32
    %c0_i32_1 = arith.constant 0 : i32
    return %c0_i32, %c0_i32_0 : i32, i32
  }
  func.func @transform_3(%arg0: i32) -> (i32, i32) {
    %c0_i32 = arith.constant 0 : i32
    %c0_i32_0 = arith.constant 0 : i32
    %c0_i32_1 = arith.constant 0 : i32
    return %c0_i32, %c0_i32_0 : i32, i32
  }
  func.func @transform_4(%arg0: i32) -> (i32, i32) {
    %c0_i32 = arith.constant 0 : i32
    %c0_i32_0 = arith.constant 0 : i32
    %c0_i32_1 = arith.constant 0 : i32
    return %c0_i32, %c0_i32_0 : i32, i32
  }
  func.func @transform_5(%arg0: i32) -> (i32, i32) {
    %c0_i32 = arith.constant 0 : i32
    %c0_i32_0 = arith.constant 0 : i32
    return %arg0, %c0_i32 : i32, i32
  }
}

</mosaic_0001>

<llo_original>
// kernel: tpu_custom_call.1
$region0: #{tpu_custom_call.1}
  #allocation0 [shape = 'u32[]', space=smem, size = 0x4, offset = 0x4, fixed_abs, tag = 'smem constant byte address 0x4 - core index']
  #allocation1 [shape = 'u32[144,128]{1,0:T(1,128)}', space=vmem, size = 0x12000, scoped, tag = 'internal scratch']
  %s0 = inlined_call_operand.vmem [shape: f32[2,32], index: 0, kind: input, shape index: {}]
  %s1 = inlined_call_operand.vmem [shape: f32[32,64], index: 1, kind: input, shape index: {}]
  %s2 = inlined_call_operand.vmem [shape: f32[1,64], index: 2, kind: input, shape index: {}]
  %s3 = inlined_call_operand.vmem [shape: f32[64,32], index: 3, kind: input, shape index: {}]
  %s4 = inlined_call_operand.vmem [shape: f32[1,32], index: 4, kind: input, shape index: {}]
  %s5 = inlined_call_operand.hbm [shape: f32[2,32], index: 5, kind: output, shape index: {}]
  %s6 = sld [smem:[#allocation0]]
  $region30: #{tpu_custom_call.1} parent=0
    _
  %s8 = ssub.s32 1, %s6
  %s9 = scalar_select 0, %s8, %s6
  $region1: #{tpu_custom_call.1} parent=0
    #allocation2 [shape = 'u8[1024]{0}', space=vmem, size = 0x400, scoped, tag = 'output window, operand 0, single buffered']
    #allocation3 [shape = 's32[1]{0}', space=sflag, size = 0x4, scoped, tag = 'scoped memory for tpu_custom_call.1']
    %10 = vsyncpa [#allocation3], 0
    // Predicated region
    $region2: #{tpu_custom_call.1} parent=1 // pred_check
      _
    $region3: #{tpu_custom_call.1} parent=1 // pred_check_branch
      %12 = sbr.rel (0) target = $region5
    $region4: #{tpu_custom_call.1} parent=1 // pred_region
      _
    $region5: #{tpu_custom_call.1} parent=1 // pred_fallthru
      _
    // Predicated region
    $region6: #{tpu_custom_call.1} parent=1 // pred_check
      _
    $region7: #{tpu_custom_call.1} parent=1 // pred_check_branch
      %14 = sbr.rel (0) target = $region9
    $region8: #{tpu_custom_call.1} parent=1 // pred_region
      _
    $region9: #{tpu_custom_call.1} parent=1 // pred_fallthru
      _
    // Predicated region
    $region10: #{tpu_custom_call.1} parent=1 // pred_check
      _
    $region11: #{tpu_custom_call.1} parent=1 // pred_check_branch
      %16 = sbr.rel (0) target = $region13
    $region12: #{tpu_custom_call.1} parent=1 // pred_region
      _
    $region13: #{tpu_custom_call.1} parent=1 // pred_fallthru
      _
    // Predicated region
    $region14: #{tpu_custom_call.1} parent=1 // pred_check
      _
    $region15: #{tpu_custom_call.1} parent=1 // pred_check_branch
      %18 = sbr.rel (0) target = $region17
    $region16: #{tpu_custom_call.1} parent=1 // pred_region
      _
    $region17: #{tpu_custom_call.1} parent=1 // pred_fallthru
      _
    // Predicated region
    $region18: #{tpu_custom_call.1} parent=1 // pred_check
      _
    $region19: #{tpu_custom_call.1} parent=1 // pred_check_branch
      %20 = sbr.rel (0) target = $region21
    $region20: #{tpu_custom_call.1} parent=1 // pred_region
      _
    $region21: #{tpu_custom_call.1} parent=1 // pred_fallthru
      _
    %v21 = vld [vmem:[%s0] sm:$0x3]
    %v22 = vld [vmem:[%s1] sm:$0xff]
    %v23 = vld [vmem:[%s1 + $0x8] sm:$0xff]
    %v24 = vld [vmem:[%s1 + $0x10] sm:$0xff]
    %v25 = vld [vmem:[%s1 + $0x18] sm:$0xff]
    %v26 = vld [vmem:[%s2] sm:$0x1]
    %v28 = vlaneseq
    %v29 = vshrl.u32 %v28, 7
    %v30 = vsub.s32 0, %v29
    %v31 = vrot.slane %v26, %v30
    %vm33 = vcmask 261120
    %v35 = vsel %vm33, %v21, 0
    %37 = vmatprep.subr.mxu0 0.0
    %38 = vmatpush1.msra.mxu0 %v22
    %39 = vmatprep.subr.mxu0 0.0
    %40 = vmatpush1.msra.mxu0 %v23
    %41 = vmatprep.subr.mxu0 0.0
    %42 = vmatpush1.msra.mxu0 %v24
    %43 = vmatprep.subr.mxu0 0.0
    %44 = vmatpush1.msra.mxu0 %v25
    %45 = vmatprep.subr.mxu0 0.0
    %46 = vmatpush1.msra.mxu0 0.0
    %47 = vmatprep.subr.mxu0 0.0
    %48 = vmatpush1.msra.mxu0 0.0
    %49 = vmatprep.subr.mxu0 0.0
    %50 = vmatpush1.msra.mxu0 0.0
    %51 = vmatprep.subr.mxu0 0.0
    %52 = vmatpush1.msra.mxu0 0.0
    %53 = vmatprep.subr.mxu0 0.0
    %54 = vmatpush1.msra.mxu0 0.0
    %55 = vmatprep.subr.mxu0 0.0
    %56 = vmatpush1.msra.mxu0 0.0
    %57 = vmatprep.subr.mxu0 0.0
    %58 = vmatpush1.msra.mxu0 0.0
    %59 = vmatprep.subr.mxu0 0.0
    %60 = vmatpush1.msra.mxu0 0.0
    %61 = vmatprep.subr.mxu0 0.0
    %62 = vmatpush1.msra.mxu0 0.0
    %63 = vmatprep.subr.mxu0 0.0
    %64 = vmatpush1.msra.mxu0 0.0
    %65 = vmatprep.subr.mxu0 0.0
    %66 = vmatpush1.msra.mxu0 0.0
    %67 = vmatprep.subr.mxu0 0.0
    %68 = vmatpush1.msra.mxu0 0.0
    %69 = vmatprep.subr.mxu0 0.0
    %70 = vmatpush1.msra.mxu0 0.0
    %71 = vmatprep.subr.mxu0 0.0
    %72 = vmatpush1.msra.mxu0 0.0
    %73 = vmatprep.subr.mxu0 0.0
    %74 = vmatpush1.msra.mxu0 0.0
    %75 = vmatprep.subr.mxu0 0.0
    %76 = vmatpush1.msra.mxu0 0.0
    %77 = vmatprep.subr.mxu0 0.0
    %78 = vmatpush1.msra.mxu0 0.0
    %79 = vmatprep.subr.mxu0 0.0
    %80 = vmatpush1.msra.mxu0 0.0
    %81 = vmatprep.subr.mxu0 0.0
    %82 = vmatpush1.msra.mxu0 0.0
    %83 = vmatprep.subr.mxu0 0.0
    %84 = vmatpush1.msra.mxu0 0.0
    %85 = vmatprep.subr.mxu0 0.0
    %86 = vmatpush1.msra.mxu0 0.0
    %87 = vmatprep.subr.mxu0 0.0
    %88 = vmatpush1.msra.mxu0 0.0
    %89 = vmatprep.subr.mxu0 0.0
    %90 = vmatpush1.msra.mxu0 0.0
    %91 = vmatprep.subr.mxu0 0.0
    %92 = vmatpush1.msra.mxu0 0.0
    %93 = vmatprep.subr.mxu0 0.0
    %94 = vmatpush1.msra.mxu0 0.0
    %95 = vmatprep.subr.mxu0 0.0
    %96 = vmatpush1.msra.mxu0 0.0
    %97 = vmatprep.subr.mxu0 0.0
    %98 = vmatpush1.msra.mxu0 0.0
    %99 = vmatprep.subr.mxu0 0.0
    %100 = vmatpush1.msra.mxu0 0.0
    %101 = vmatprep.mubr.f32.mxu0 0.0
    %102 = vmatmul.mubr.f32.gmra.mrb[0].mxu0 %v35
    %v103 = vpop.f32.mrb[0].mxu0
    %v104 = vadd.f32 %v31, %v103
    %v105 = vpop.f32.mrb[0].mxu0
    %106 = vdwg.mxu0
    %v107 = vmul.f32 %v104, 0.01
    %v108 = vmax.f32 %v104, %v107
    %v109 = vld [vmem:[%s3] sm:$0xff]
    %v110 = vld [vmem:[%s3 + $0x8] sm:$0xff]
    %v111 = vld [vmem:[%s3 + $0x10] sm:$0xff]
    %v112 = vld [vmem:[%s3 + $0x18] sm:$0xff]
    %v113 = vld [vmem:[%s3 + $0x20] sm:$0xff]
    %v114 = vld [vmem:[%s3 + $0x28] sm:$0xff]
    %v115 = vld [vmem:[%s3 + $0x30] sm:$0xff]
    %v116 = vld [vmem:[%s3 + $0x38] sm:$0xff]
    %v117 = vld [vmem:[%s4] sm:$0x1]
    %v119 = vlaneseq
    %v120 = vshrl.u32 %v119, 7
    %v121 = vsub.s32 0, %v120
    %v122 = vrot.slane %v117, %v121
    %vm124 = vcmask 523264
    %v126 = vsel %vm124, %v108, 0
    %128 = vmatprep.subr.mxu0 0.0
    %129 = vmatpush1.msra.mxu0 %v109
    %130 = vmatprep.subr.mxu0 0.0
    %131 = vmatpush1.msra.mxu0 %v110
    %132 = vmatprep.subr.mxu0 0.0
    %133 = vmatpush1.msra.mxu0 %v111
    %134 = vmatprep.subr.mxu0 0.0
    %135 = vmatpush1.msra.mxu0 %v112
    %136 = vmatprep.subr.mxu0 0.0
    %137 = vmatpush1.msra.mxu0 %v113
    %138 = vmatprep.subr.mxu0 0.0
    %139 = vmatpush1.msra.mxu0 %v114
    %140 = vmatprep.subr.mxu0 0.0
    %141 = vmatpush1.msra.mxu0 %v115
    %142 = vmatprep.subr.mxu0 0.0
    %143 = vmatpush1.msra.mxu0 %v116
    %144 = vmatprep.subr.mxu0 0.0
    %145 = vmatpush1.msra.mxu0 0.0
    %146 = vmatprep.subr.mxu0 0.0
    %147 = vmatpush1.msra.mxu0 0.0
    %148 = vmatprep.subr.mxu0 0.0
    %149 = vmatpush1.msra.mxu0 0.0
    %150 = vmatprep.subr.mxu0 0.0
    %151 = vmatpush1.msra.mxu0 0.0
    %152 = vmatprep.subr.mxu0 0.0
    %153 = vmatpush1.msra.mxu0 0.0
    %154 = vmatprep.subr.mxu0 0.0
    %155 = vmatpush1.msra.mxu0 0.0
    %156 = vmatprep.subr.mxu0 0.0
    %157 = vmatpush1.msra.mxu0 0.0
    %158 = vmatprep.subr.mxu0 0.0
    %159 = vmatpush1.msra.mxu0 0.0
    %160 = vmatprep.subr.mxu0 0.0
    %161 = vmatpush1.msra.mxu0 0.0
    %162 = vmatprep.subr.mxu0 0.0
    %163 = vmatpush1.msra.mxu0 0.0
    %164 = vmatprep.subr.mxu0 0.0
    %165 = vmatpush1.msra.mxu0 0.0
    %166 = vmatprep.subr.mxu0 0.0
    %167 = vmatpush1.msra.mxu0 0.0
    %168 = vmatprep.subr.mxu0 0.0
    %169 = vmatpush1.msra.mxu0 0.0
    %170 = vmatprep.subr.mxu0 0.0
    %171 = vmatpush1.msra.mxu0 0.0
    %172 = vmatprep.subr.mxu0 0.0
    %173 = vmatpush1.msra.mxu0 0.0
    %174 = vmatprep.subr.mxu0 0.0
    %175 = vmatpush1.msra.mxu0 0.0
    %176 = vmatprep.subr.mxu0 0.0
    %177 = vmatpush1.msra.mxu0 0.0
    %178 = vmatprep.subr.mxu0 0.0
    %179 = vmatpush1.msra.mxu0 0.0
    %180 = vmatprep.subr.mxu0 0.0
    %181 = vmatpush1.msra.mxu0 0.0
    %182 = vmatprep.subr.mxu0 0.0
    %183 = vmatpush1.msra.mxu0 0.0
    %184 = vmatprep.subr.mxu0 0.0
    %185 = vmatpush1.msra.mxu0 0.0
    %186 = vmatprep.subr.mxu0 0.0
    %187 = vmatpush1.msra.mxu0 0.0
    %188 = vmatprep.subr.mxu0 0.0
    %189 = vmatpush1.msra.mxu0 0.0
    %190 = vmatprep.subr.mxu0 0.0
    %191 = vmatpush1.msra.mxu0 0.0
    %192 = vmatprep.mubr.f32.mxu0 0.0
    %193 = vmatmul.mubr.f32.gmra.mrb[0].mxu0 %v126
    %v194 = vpop.f32.mrb[0].mxu0
    %v195 = vadd.f32 %v122, %v194
    %v196 = vpop.f32.mrb[0].mxu0
    %197 = vdwg.mxu0
    %vm198 = vcmask 254976
    %199 = vst.msk [vmem:[#allocation2] sm:$0x3] %vm198, %v195
    // Predicated region
    $region22: #{tpu_custom_call.1} parent=1 // pred_check
      _
    $region23: #{tpu_custom_call.1} parent=1 // pred_check_branch
      %201 = sbr.rel (0) target = $region25
    $region24: #{tpu_custom_call.1} parent=1 // pred_region
      %s203 = ssub.s32 32, 32
      %204 = vsyncadd [#allocation3], %s203
      %s206 = sshll.u32 [#allocation2], 4
      %s207 = int_to_ptr.vmem [resolvable:$true] %s206
      %209 = dma.vmem_to_hbm [thread:$0]  %s207, 32, %s5, [#allocation3]
    $region25: #{tpu_custom_call.1} parent=1 // pred_fallthru
      _
    // Predicated region
    $region26: #{tpu_custom_call.1} parent=1 // pred_check
      _
    $region27: #{tpu_custom_call.1} parent=1 // pred_check_branch
      %211 = sbr.rel (0) target = $region29
    $region28: #{tpu_custom_call.1} parent=1 // pred_region
      %212 = dma.done [#allocation3], 32
    $region29: #{tpu_custom_call.1} parent=1 // pred_fallthru
      _
    %213 = vsyncpa [#allocation3], 1

</llo_original>
